<compile_context>
chip_gen: v7x
topology: tpu7x:2x2x1
jax: 0.10.0
libtpu: 0.0.40
codegen_flags: <defaults>
</compile_context>

<pallas_src>
import jax
import jax.numpy as jnp
from jax.experimental import pallas as pl
from jax.experimental.pallas import tpu as pltpu


# Tensors below this size skip pallas_call entirely: launch overhead of the
# custom call (single-digit microseconds) dominates the sub-microsecond DMA.
_SMALL_COPY_BYTES = 1 << 20        # 1 MiB

# Above this size the copy is split into several slices so multiple DMAs are
# in flight at once (closer to HBM roofline, especially on v7x).
_MULTI_DMA_MIN_BYTES = 4 << 20     # 4 MiB
_MAX_DMA_SLICES = 8


def _whole_array_dma_kernel(x_hbm, o_hbm, sem):
    # Single whole-array HBM -> HBM DMA; no VMEM staging, no vld/vst slots.
    cp = pltpu.make_async_copy(x_hbm, o_hbm, sem)
    cp.start()
    cp.wait()


def _make_sliced_dma_kernel(slice_starts, slice_sizes):
    """Kernel issuing len(slice_starts) DMAs: start-all, then wait-all."""

    def kernel(x_hbm, o_hbm, sems):
        copies = []
        for i, (start, size) in enumerate(zip(slice_starts, slice_sizes)):
            cp = pltpu.make_async_copy(
                x_hbm.at[pl.ds(start, size)],
                o_hbm.at[pl.ds(start, size)],
                sems.at[i],
            )
            cp.start()          # issue immediately; do NOT wait yet
            copies.append(cp)
        # Wait only after every DMA has been issued -> multiple in flight.
        for cp in copies:
            cp.wait()

    return kernel


def _num_dma_slices(x: jax.Array) -> int:
    total_bytes = x.size * jnp.dtype(x.dtype).itemsize
    if x.ndim == 0 or x.shape[0] <= 1 or total_bytes < _MULTI_DMA_MIN_BYTES:
        return 1
    return min(_MAX_DMA_SLICES, x.shape[0])


def _identity_copy_on_device(x: jax.Array, num_slices: int | None = None) -> jax.Array:
    """Materialize a fresh buffer with identical contents via HBM->HBM DMA."""
    if num_slices is None:
        num_slices = _num_dma_slices(x)

    bytes_accessed = 2 * x.size * jnp.dtype(x.dtype).itemsize  # read + write
    cost = pl.CostEstimate(flops=0, transcendentals=0, bytes_accessed=bytes_accessed)

    if num_slices <= 1 or x.ndim == 0 or x.shape[0] <= 1:
        kernel = _whole_array_dma_kernel
        scratch = [pltpu.SemaphoreType.DMA(())]
    else:
        lead = x.shape[0]
        num_slices = min(num_slices, lead)
        base, rem = divmod(lead, num_slices)
        sizes = tuple(base + (1 if i < rem else 0) for i in range(num_slices))
        starts = tuple(sum(sizes[:i]) for i in range(num_slices))
        kernel = _make_sliced_dma_kernel(starts, sizes)
        scratch = [pltpu.SemaphoreType.DMA((num_slices,))]

    return pl.pallas_call(
        kernel,
        out_shape=jax.ShapeDtypeStruct(x.shape, x.dtype),
        in_specs=[pl.BlockSpec(memory_space=pl.ANY)],
        out_specs=pl.BlockSpec(memory_space=pl.ANY),
        scratch_shapes=scratch,
        cost_estimate=cost,
    )(x)


def basenet_forward(x: jax.Array, *, materialize: bool = False,
                    force_pallas: bool = False) -> jax.Array:
    """Pallas equivalent of BaseNet.forward.

    BaseNet.forward is `pass` (returns None); the nearest kernel-expressible
    semantics is identity.  The default (fastest) path returns the input
    untouched — the zero-copy / aliased-buffer version, no HBM traffic.
    With materialize=True a fresh buffer with identical contents is produced:
    small tensors use a plain XLA copy (dodges pallas_call launch overhead),
    large tensors use the Pallas HBM->HBM multi-DMA kernel.
    """
    # TODO(synk): PyTorch BaseNet.forward literally returns None; we return the
    # input unchanged (identity) as the nearest kernel-expressible semantics.
    if not materialize:
        return x

    total_bytes = x.size * jnp.dtype(x.dtype).itemsize
    if total_bytes < _SMALL_COPY_BYTES and not force_pallas:
        # Small-array fallback: kernel launch overhead >> copy time.
        return jnp.copy(x)

    return _identity_copy_on_device(x)


if __name__ == "__main__":
    key = jax.random.PRNGKey(0)
    # Small NCHW input consistent with a conv-style net: batch=2, channels=4,
    # spatial 16x16.
    x = jax.random.normal(key, (2, 4, 16, 16), dtype=jnp.float32)

    # 1) Fast path (default): no-op forward, zero HBM traffic (aliases input).
    y_fast = basenet_forward(x)

    # 2) Materialize at small size: XLA fallback copy (no pallas launch).
    y_small = jax.block_until_ready(basenet_forward(x, materialize=True))

    # 3) Pallas whole-array HBM->HBM DMA kernel (forced to exercise it here).
    y_dma = jax.block_until_ready(
        basenet_forward(x, materialize=True, force_pallas=True))

    # 4) Pallas multi-DMA kernel (start-all-then-wait-all), forced to 2 slices
    #    so the large-array path is exercised at this small test shape.
    y_multi = jax.block_until_ready(_identity_copy_on_device(x, num_slices=2))

    # Identity semantics checks (forward is a no-op on the data).
    for y in (y_fast, y_small, y_dma, y_multi):
        assert y.shape == x.shape and y.dtype == x.dtype
        assert bool(jnp.all(y == x))

    print("KERNEL_OK")
</pallas_src>

<mosaic_0001>
module attributes {stable_mosaic.version = 11 : i64} {
  func.func @_whole_array_dma_kernel(%arg0: memref<2x4x16x16xf32, #tpu.memory_space<any>>, %arg1: memref<2x4x16x16xf32, #tpu.memory_space<any>>, %arg2: memref<!tpu.dma_semaphore, #tpu.memory_space<semaphore_mem>>) attributes {dimension_semantics = [], scalar_prefetch = 0 : i64, scratch_operands = 1 : i64, tpu.core_type = #tpu.core_type<tc>} {
    tpu.enqueue_dma source(%arg0 : memref<2x4x16x16xf32, #tpu.memory_space<any>>) target(%arg1 : memref<2x4x16x16xf32, #tpu.memory_space<any>>) target_semaphore(%arg2 : memref<!tpu.dma_semaphore, #tpu.memory_space<semaphore_mem>>)
    tpu.wait_dma2 semaphore(%arg2 : memref<!tpu.dma_semaphore, #tpu.memory_space<semaphore_mem>>) src(%arg0 : memref<2x4x16x16xf32, #tpu.memory_space<any>>) dst(%arg1 : memref<2x4x16x16xf32, #tpu.memory_space<any>>)
    return
  }
}

</mosaic_0001>

<llo_original>
// kernel: tpu_custom_call.1
$region0: #{tpu_custom_call.1}
  #allocation0 [shape = 'u32[]', space=smem, size = 0x4, offset = 0x4, fixed_abs, tag = 'smem constant byte address 0x4 - core index']
  #allocation1 [shape = 'u32[144,128]{1,0:T(1,128)}', space=vmem, size = 0x12000, scoped, tag = 'internal scratch']
  #allocation2 [shape = 's32[1]{0}', space=sflag, size = 0x4, scoped, tag = 'scratch operand']
  #allocation3 [shape = 's32[]', space=sflag, size = 0x4, offset = 0, fixed_abs, tag = 'sflag constant byte address 0x0 - dummy sync flag']
  #allocation4 [shape = 'u32[0]{0}', space=smem, size = 0, offset = 0, fixed_abs, tag = 'smem constant byte address 0x0 - null']
  %s0 = inlined_call_operand.hbm [shape: f32[2,4,16,16], index: 0, kind: input, shape index: {}]
  %s1 = inlined_call_operand.hbm [shape: f32[2,4,16,16], index: 1, kind: output, shape index: {}]
  %s2 = sld [smem:[#allocation0]]
  $region2: #{tpu_custom_call.1} parent=0
    _
  %s4 = ssub.s32 1, %s2
  %s5 = scalar_select 0, %s4, %s2
  %s7 = sshll.u32 1, 14
  %s8 = sxor.u32 4294967295, %s7
  %s11 = sshll.u32 3, 24
  %s12 = sxor.u32 4294967295, %s11
  %s13 = sand.u32 0, %s12
  %s15 = sor.u32 %s13, 0
  %18 = dma.general %s0, 2048, %s1, [#allocation2], [#allocation3], [#allocation4], %s15, 0
  %s19 = smul.u32 2, 4
  %s20 = smul.u32 %s19, 16
  %s21 = smul.u32 %s20, 1
  %s22 = sshll.u32 %s21, 4
  %23 = dma.done [#allocation2], %s22
  %24 = vsyncmov [#allocation2]
  %s25 = vpop.sfrf %24
  %p26 = scmp.eq.s32.totalorder %s25, 0
  %p27 = pneg %p26
  %29 = shalt.err (%p27)

</llo_original>
